<compile_context>
chip_gen: v5e
topology: v5e:2x2
jax: 0.10.0
libtpu: 0.0.40
codegen_flags: <defaults>
</compile_context>

<pallas_src>
import jax
import jax.numpy as jnp
from jax.experimental import pallas as pl
from jax.experimental.pallas import tpu as pltpu

D_MODEL = 32
N_HEADS = 4
HEAD_DIM = D_MODEL // N_HEADS
D_FF = 64
NUM_CLASSES = 24
LN_EPS = 1e-5
LANE = 128
_HI = jax.lax.Precision.HIGHEST

# Rows of the small f32 constant slab (one (16, 128) array).
_V_BV = 0      # value-projection bias (32)
_V_SCLS = 1    # CLS self-score, bscore-shift folded, repeated per head (32)
_V_VCLS = 2    # CLS value projection, no bias (32)
_V_R1 = 3      # cls_token + out_proj bias (32)
_V_LN1G = 4    # LN1 gamma (32)
_V_LN1B = 5    # LN1 beta  (32)
_V_B1 = 6      # linear1 bias (64)
_V_B2 = 7      # linear2 bias (32)
_V_BFC = 8     # classifier bias with LN2 beta folded in (24)
_VEC_ROWS = 16


def _ln(x):
    mean = jnp.mean(x, axis=-1, keepdims=True)
    var = jnp.mean(jnp.square(x - mean), axis=-1, keepdims=True)
    return (x - mean) * jax.lax.rsqrt(var + LN_EPS)


def transformer_cls_kernel(x_ref, watt_ref, wof_ref, w1_ref, w2_ref, wfc_ref,
                           vec_ref, out_ref):
    """x_ref: (BB, S/P, 32*P); weights bf16; vec_ref (16,128) f32; out (BB,1,24)."""
    BB, S_P, DP = x_ref.shape
    P = DP // D_MODEL
    NP = BB * S_P

    # ---- fused per-token projection: values + head-expanded CLS scores ------
    xb = x_ref[...].reshape(NP, DP).astype(jnp.bfloat16)
    vs = jnp.dot(xb, watt_ref[...], preferred_element_type=jnp.float32)
    vs3 = vs.reshape(BB, S_P, 2 * DP)
    v3 = vs3[..., :DP]          # (BB, S_P, DP) per-token values (bias folded out)
    s3 = vs3[..., DP:]          # (BB, S_P, DP) per-head scores, repeated 8x

    # ---- softmax of the CLS query over T = S+1 keys (lane-dense) ------------
    s_cls = vec_ref[_V_SCLS:_V_SCLS + 1, 0:D_MODEL]          # (1, 32)
    m = jnp.max(s3, axis=1)                                   # (BB, DP)
    mh = m[:, 0:D_MODEL]
    for j in range(1, P):
        mh = jnp.maximum(mh, m[:, D_MODEL * j:D_MODEL * (j + 1)])
    mh = jnp.maximum(mh, s_cls)                               # (BB, 32)
    m_full = jnp.concatenate([mh] * P, axis=1) if P > 1 else mh

    p3 = jnp.exp(s3 - m_full[:, None, :])                     # (BB, S_P, DP)
    den = jnp.sum(p3, axis=1)                                 # (BB, DP)
    dh = den[:, 0:D_MODEL]
    for j in range(1, P):
        dh = dh + den[:, D_MODEL * j:D_MODEL * (j + 1)]
    p_cls = jnp.exp(s_cls - mh)                               # (BB, 32)
    inv = pl.reciprocal(dh + p_cls, approx=True)              # (BB, 32)
    inv_full = jnp.concatenate([inv] * P, axis=1) if P > 1 else inv

    # ---- probability-weighted value sum (normalize after the token sum) ------
    folded = jnp.sum(p3 * v3, axis=1) * inv_full              # (BB, DP)
    bv = vec_ref[_V_BV:_V_BV + 1, 0:D_MODEL]
    v_cls = vec_ref[_V_VCLS:_V_VCLS + 1, 0:D_MODEL]
    add_row = (p_cls * inv) * v_cls + bv                      # (BB, 32)
    if P > 1:
        add_row = jnp.concatenate(
            [add_row, jnp.zeros((BB, DP - D_MODEL), jnp.float32)], axis=1)
    folded = folded + add_row

    # ---- out-projection (replicated fold matrix) + CLS residual + LN1 --------
    r1 = vec_ref[_V_R1:_V_R1 + 1, 0:D_MODEL]
    g1 = vec_ref[_V_LN1G:_V_LN1G + 1, 0:D_MODEL]
    b1n = vec_ref[_V_LN1B:_V_LN1B + 1, 0:D_MODEL]
    attn = jnp.dot(folded.astype(jnp.bfloat16), wof_ref[...],
                   preferred_element_type=jnp.float32) + r1
    x1 = _ln(attn) * g1 + b1n                                  # (BB, 32)

    # ---- feed-forward + residual + LN2 (affine folded into classifier) -------
    b1 = vec_ref[_V_B1:_V_B1 + 1, 0:D_FF]
    b2 = vec_ref[_V_B2:_V_B2 + 1, 0:D_MODEL]
    h1 = jnp.maximum(
        jnp.dot(x1.astype(jnp.bfloat16), w1_ref[...],
                preferred_element_type=jnp.float32) + b1, 0.0)
    ff = jnp.dot(h1.astype(jnp.bfloat16), w2_ref[...],
                 preferred_element_type=jnp.float32) + b2
    x2n = _ln(x1 + ff)

    # ---- classifier head ------------------------------------------------------
    bfc = vec_ref[_V_BFC:_V_BFC + 1, 0:NUM_CLASSES]
    logits = jnp.dot(x2n.astype(jnp.bfloat16), wfc_ref[...],
                     preferred_element_type=jnp.float32) + bfc
    out_ref[...] = logits.reshape(BB, 1, NUM_CLASSES).astype(out_ref.dtype)


def _pack_params(params, pack):
    """Pre-transpose / pre-fold parameters (bf16 matrices + one f32 vector slab)."""
    D, H, HD, P = D_MODEL, N_HEADS, HEAD_DIM, pack
    Wq = params["in_proj_w"][0:D]
    Wk = params["in_proj_w"][D:2 * D]
    Wv = params["in_proj_w"][2 * D:3 * D]
    bq = params["in_proj_b"][0:D]
    bk = params["in_proj_b"][D:2 * D]
    bv = params["in_proj_b"][2 * D:3 * D]
    cls = params["cls_token"]
    scale = 1.0 / float(HD) ** 0.5

    # Batch-independent CLS projections.
    q_cls = jnp.dot(cls, Wq.T, precision=_HI) + bq
    k_cls = jnp.dot(cls, Wk.T, precision=_HI) + bk
    v_cls = jnp.dot(cls, Wv.T, precision=_HI)                # value bias folded later
    qh = q_cls.reshape(H, HD)
    kh = k_cls.reshape(H, HD)

    # Fold q_cls (and the 1/sqrt(hd) scale) into the key projection; the
    # per-token score bias (bk . q_cls) is a per-head softmax shift, folded
    # into the constant CLS self-score instead.
    bscore = scale * jnp.sum(bk.reshape(H, HD) * qh, axis=1)                # (4,)
    s_cls = scale * jnp.sum(qh * kh, axis=1) - bscore                       # (4,)
    Wscore = scale * jnp.einsum("dhe,he->dh", Wk.T.reshape(D, H, HD), qh,
                                precision=_HI)                              # (32, 4)
    Wscore_rep = jnp.repeat(Wscore, HD, axis=1)                             # (32, 32)

    # Block-diagonal fused projection for `pack` tokens per row:
    #   columns [0, 32P)   -> per-token values
    #   columns [32P, 64P) -> per-head scores already repeated 8x along lanes.
    DP = D * P
    watt = jnp.zeros((DP, 2 * DP), jnp.float32)
    for j in range(P):
        watt = watt.at[D * j:D * (j + 1), D * j:D * (j + 1)].set(Wv.T)
        watt = watt.at[D * j:D * (j + 1), DP + D * j:DP + D * (j + 1)].set(Wscore_rep)

    # Out-projection replicated P times so the packed context contracts directly.
    wof = jnp.concatenate([params["out_proj_w"].T] * P, axis=0)             # (32P, 32)
    w1 = params["lin1_w"].T                                                 # (32, 64)
    w2 = params["lin2_w"].T                                                 # (64, 32)
    # LayerNorm-2 affine folded into the classifier (exact algebraic fold).
    wfc = params["fc_w"].T * params["ln2_g"][:, None]                       # (32, 24)
    bfc = params["fc_b"] + jnp.dot(params["fc_w"], params["ln2_b"], precision=_HI)

    vec = jnp.zeros((_VEC_ROWS, LANE), jnp.float32)
    vec = vec.at[_V_BV, 0:D].set(bv)
    vec = vec.at[_V_SCLS, 0:D].set(jnp.repeat(s_cls, HD))
    vec = vec.at[_V_VCLS, 0:D].set(v_cls)
    vec = vec.at[_V_R1, 0:D].set(cls + params["out_proj_b"])
    vec = vec.at[_V_LN1G, 0:D].set(params["ln1_g"])
    vec = vec.at[_V_LN1B, 0:D].set(params["ln1_b"])
    vec = vec.at[_V_B1, 0:D_FF].set(params["lin1_b"])
    vec = vec.at[_V_B2, 0:D].set(params["lin2_b"])
    vec = vec.at[_V_BFC, 0:NUM_CLASSES].set(bfc)

    bf = lambda a: a.astype(jnp.bfloat16)
    return bf(watt), bf(wof), bf(w1), bf(w2), bf(wfc), vec


def transformer_alpha_classifier(x, params, *, tokens_per_step=8192):
    """x: (B, S, 32) float32 (or bfloat16) -> (B, 24) float32."""
    B, S, D = x.shape
    assert D == D_MODEL
    # Largest token pack in {4, 2, 1} dividing S -> contraction depth 32*pack.
    pack = 4 if S % 4 == 0 else (2 if S % 2 == 0 else 1)
    s_p = S // pack
    dp = D * pack
    xr = x.reshape(B, s_p, dp)

    watt, wof, w1, w2, wfc, vec = _pack_params(params, pack)

    # ~tokens_per_step tokens per grid step; force >= 2 steps whenever B > 1 so
    # both TensorCores get work on dual-TC parts (v7x). (Padded rows of a
    # ragged last block are computed on stale VMEM and dropped from the output.)
    bb = max(1, min(B, tokens_per_step // S))
    if B > 1 and bb >= B:
        bb = (B + 1) // 2
    grid = (pl.cdiv(B, bb),)

    out = pl.pallas_call(
        transformer_cls_kernel,
        out_shape=jax.ShapeDtypeStruct((B, 1, NUM_CLASSES), jnp.float32),
        grid=grid,
        in_specs=[
            # TODO(synk): add pipeline_mode=pl.Buffered(3) here if profiling
            #             shows the x DMA exposed after the compute shrink.
            pl.BlockSpec((bb, s_p, dp), lambda b: (b, 0, 0)),
            pl.BlockSpec((dp, 2 * dp), lambda b: (0, 0)),
            pl.BlockSpec((dp, D_MODEL), lambda b: (0, 0)),
            pl.BlockSpec((D_MODEL, D_FF), lambda b: (0, 0)),
            pl.BlockSpec((D_FF, D_MODEL), lambda b: (0, 0)),
            pl.BlockSpec((D_MODEL, NUM_CLASSES), lambda b: (0, 0)),
            pl.BlockSpec((_VEC_ROWS, LANE), lambda b: (0, 0)),
        ],
        out_specs=pl.BlockSpec((bb, 1, NUM_CLASSES), lambda b: (b, 0, 0)),
        compiler_params=pltpu.CompilerParams(
            dimension_semantics=("parallel",),
            vmem_limit_bytes=40 * 1024 * 1024),
    )(xr, watt, wof, w1, w2, wfc, vec)
    return out.reshape(B, NUM_CLASSES)


def init_params(key):
    ks = jax.random.split(key, 16)
    s = 0.05
    n = lambda k, shape: jax.random.normal(k, shape, jnp.float32) * s
    return {
        "cls_token":  n(ks[0], (D_MODEL,)),
        "in_proj_w":  n(ks[1], (3 * D_MODEL, D_MODEL)),
        "in_proj_b":  n(ks[2], (3 * D_MODEL,)),
        "out_proj_w": n(ks[3], (D_MODEL, D_MODEL)),
        "out_proj_b": n(ks[4], (D_MODEL,)),
        "lin1_w":     n(ks[5], (D_FF, D_MODEL)),
        "lin1_b":     n(ks[6], (D_FF,)),
        "lin2_w":     n(ks[7], (D_MODEL, D_FF)),
        "lin2_b":     n(ks[8], (D_MODEL,)),
        "ln1_g":      1.0 + n(ks[9], (D_MODEL,)),
        "ln1_b":      n(ks[10], (D_MODEL,)),
        "ln2_g":      1.0 + n(ks[11], (D_MODEL,)),
        "ln2_b":      n(ks[12], (D_MODEL,)),
        "fc_w":       n(ks[13], (NUM_CLASSES, D_MODEL)),
        "fc_b":       n(ks[14], (NUM_CLASSES,)),
    }


def _ln_affine(x, g, b):
    mean = jnp.mean(x, axis=-1, keepdims=True)
    var = jnp.mean(jnp.square(x - mean), axis=-1, keepdims=True)
    return (x - mean) * jax.lax.rsqrt(var + LN_EPS) * g + b


def _reference(x, params):
    """Pure-JAX f32 reference of the full transformer-encoder-layer math."""
    B, S, D = x.shape
    cls = jnp.broadcast_to(params["cls_token"].reshape(1, 1, D), (B, 1, D))
    t = jnp.concatenate([cls, x], axis=1)                           # (B, T, D)
    qkv = jnp.einsum("btd,ed->bte", t, params["in_proj_w"], precision=_HI)
    qkv = qkv + params["in_proj_b"]
    q, k, v = qkv[..., :D], qkv[..., D:2 * D], qkv[..., 2 * D:]
    split = lambda a: a.reshape(B, -1, N_HEADS, HEAD_DIM).transpose(0, 2, 1, 3)
    qh, kh, vh = split(q), split(k), split(v)
    s = jnp.einsum("bhqd,bhkd->bhqk", qh, kh, precision=_HI)
    s = s / jnp.sqrt(jnp.float32(HEAD_DIM))
    p = jax.nn.softmax(s, axis=-1)
    o = jnp.einsum("bhqk,bhkd->bhqd", p, vh, precision=_HI)
    o = o.transpose(0, 2, 1, 3).reshape(B, -1, D)
    attn = jnp.einsum("btd,ed->bte", o, params["out_proj_w"], precision=_HI)
    attn = attn + params["out_proj_b"]
    x1 = _ln_affine(t + attn, params["ln1_g"], params["ln1_b"])
    h1 = jax.nn.relu(
        jnp.einsum("btd,ed->bte", x1, params["lin1_w"], precision=_HI)
        + params["lin1_b"])
    ff = jnp.einsum("bte,de->btd", h1, params["lin2_w"], precision=_HI)
    ff = ff + params["lin2_b"]
    x2 = _ln_affine(x1 + ff, params["ln2_g"], params["ln2_b"])
    return (jnp.einsum("bd,cd->bc", x2[:, 0, :], params["fc_w"], precision=_HI)
            + params["fc_b"])


if __name__ == "__main__":
    key = jax.random.PRNGKey(0)
    k_param, k_x = jax.random.split(key)
    params = init_params(k_param)

    B, S = 4, 8
    x = jax.random.normal(k_x, (B, S, D_MODEL), jnp.float32)

    fwd = jax.jit(transformer_alpha_classifier)
    out = jax.block_until_ready(fwd(x, params))

    ref = _reference(x, params)
    assert out.shape == (B, NUM_CLASSES)
    # bf16 MXU operands (f32 accumulation) -> compare at a bf16-appropriate tol.
    assert jnp.allclose(out, ref, atol=2e-2, rtol=2e-2), "mismatch vs JAX reference"

    print("KERNEL_OK")
</pallas_src>

<mosaic_0001>
module attributes {stable_mosaic.version = 11 : i64} {
  func.func @transformer_cls_kernel(%arg0: i32, %arg1: memref<2x2x128xf32, #tpu.memory_space<vmem>>, %arg2: memref<128x256xbf16, #tpu.memory_space<vmem>>, %arg3: memref<128x32xbf16, #tpu.memory_space<vmem>>, %arg4: memref<32x64xbf16, #tpu.memory_space<vmem>>, %arg5: memref<64x32xbf16, #tpu.memory_space<vmem>>, %arg6: memref<32x24xbf16, #tpu.memory_space<vmem>>, %arg7: memref<16x128xf32, #tpu.memory_space<vmem>>, %arg8: memref<2x1x24xf32, #tpu.memory_space<vmem>>) attributes {dimension_semantics = [#tpu.dimension_semantics<parallel>], iteration_bounds = array<i64: 2>, scalar_prefetch = 0 : i64, scratch_operands = 0 : i64, tpu.core_type = #tpu.core_type<tc>, window_params = [{transform_indices = @transform_0, window_bounds = array<i64: 2, 2, 128>}, {pipeline_mode = #tpu.pipeline_mode<synchronous>, transform_indices = @transform_1, window_bounds = array<i64: 128, 256>}, {pipeline_mode = #tpu.pipeline_mode<synchronous>, transform_indices = @transform_2, window_bounds = array<i64: 128, 32>}, {pipeline_mode = #tpu.pipeline_mode<synchronous>, transform_indices = @transform_3, window_bounds = array<i64: 32, 64>}, {pipeline_mode = #tpu.pipeline_mode<synchronous>, transform_indices = @transform_4, window_bounds = array<i64: 64, 32>}, {pipeline_mode = #tpu.pipeline_mode<synchronous>, transform_indices = @transform_5, window_bounds = array<i64: 32, 24>}, {pipeline_mode = #tpu.pipeline_mode<synchronous>, transform_indices = @transform_6, window_bounds = array<i64: 16, 128>}, {transform_indices = @transform_7, window_bounds = array<i64: 2, 1, 24>}]} {
    %c0 = arith.constant 0 : index
    %c0_0 = arith.constant 0 : index
    %c0_1 = arith.constant 0 : index
    %0 = vector.load %arg1[%c0, %c0_0, %c0_1] : memref<2x2x128xf32, #tpu.memory_space<vmem>>, vector<2x2x128xf32>
    %1 = vector.shape_cast %0 : vector<2x2x128xf32> to vector<4x128xf32>
    %2 = arith.truncf %1 : vector<4x128xf32> to vector<4x128xbf16>
    %c0_2 = arith.constant 0 : index
    %c0_3 = arith.constant 0 : index
    %3 = vector.load %arg2[%c0_2, %c0_3] : memref<128x256xbf16, #tpu.memory_space<vmem>>, vector<128x256xbf16>
    %cst = arith.constant dense<0.000000e+00> : vector<4x256xf32>
    %4 = tpu.matmul %2, %3, %cst {dimension_numbers = #tpu.dot_dimension_numbers<[1], [0], [0], [1], [0, 0, 1, 1], [], []>} : vector<4x128xbf16>, vector<128x256xbf16>, vector<4x256xf32> -> vector<4x256xf32>
    %5 = vector.shape_cast %4 : vector<4x256xf32> to vector<2x2x256xf32>
    %6 = vector.extract_strided_slice %5 {offsets = [0, 0, 0], sizes = [2, 2, 128], strides = [1, 1, 1]} : vector<2x2x256xf32> to vector<2x2x128xf32>
    %7 = vector.extract_strided_slice %5 {offsets = [0, 0, 128], sizes = [2, 2, 128], strides = [1, 1, 1]} : vector<2x2x256xf32> to vector<2x2x128xf32>
    %c1 = arith.constant 1 : index
    %c0_4 = arith.constant 0 : index
    %8 = vector.load %arg7[%c1, %c0_4] : memref<16x128xf32, #tpu.memory_space<vmem>>, vector<1x32xf32>
    %cst_5 = arith.constant dense<0xFF800000> : vector<2x128xf32>
    %9 = vector.multi_reduction <maximumf>, %7, %cst_5 [1] : vector<2x2x128xf32> to vector<2x128xf32>
    %10 = vector.extract_strided_slice %9 {offsets = [0, 0], sizes = [2, 32], strides = [1, 1]} : vector<2x128xf32> to vector<2x32xf32>
    %11 = vector.extract_strided_slice %9 {offsets = [0, 32], sizes = [2, 32], strides = [1, 1]} : vector<2x128xf32> to vector<2x32xf32>
    %12 = arith.maximumf %10, %11 : vector<2x32xf32>
    %13 = vector.extract_strided_slice %9 {offsets = [0, 64], sizes = [2, 32], strides = [1, 1]} : vector<2x128xf32> to vector<2x32xf32>
    %14 = arith.maximumf %12, %13 : vector<2x32xf32>
    %15 = vector.extract_strided_slice %9 {offsets = [0, 96], sizes = [2, 32], strides = [1, 1]} : vector<2x128xf32> to vector<2x32xf32>
    %16 = arith.maximumf %14, %15 : vector<2x32xf32>
    %17 = vector.broadcast %8 : vector<1x32xf32> to vector<2x32xf32>
    %18 = arith.maximumf %16, %17 : vector<2x32xf32>
    %19 = tpu.concatenate %18, %18, %18, %18 in 1 : vector<2x32xf32>, vector<2x32xf32>, vector<2x32xf32>, vector<2x32xf32> -> vector<2x128xf32>
    %20 = vector.shape_cast %19 : vector<2x128xf32> to vector<2x1x128xf32>
    %21 = vector.broadcast %20 : vector<2x1x128xf32> to vector<2x2x128xf32>
    %22 = arith.subf %7, %21 : vector<2x2x128xf32>
    %23 = math.exp %22 : vector<2x2x128xf32>
    %cst_6 = arith.constant dense<0.000000e+00> : vector<2x128xf32>
    %24 = vector.multi_reduction <add>, %23, %cst_6 [1] : vector<2x2x128xf32> to vector<2x128xf32>
    %25 = vector.extract_strided_slice %24 {offsets = [0, 0], sizes = [2, 32], strides = [1, 1]} : vector<2x128xf32> to vector<2x32xf32>
    %26 = vector.extract_strided_slice %24 {offsets = [0, 32], sizes = [2, 32], strides = [1, 1]} : vector<2x128xf32> to vector<2x32xf32>
    %27 = arith.addf %25, %26 : vector<2x32xf32>
    %28 = vector.extract_strided_slice %24 {offsets = [0, 64], sizes = [2, 32], strides = [1, 1]} : vector<2x128xf32> to vector<2x32xf32>
    %29 = arith.addf %27, %28 : vector<2x32xf32>
    %30 = vector.extract_strided_slice %24 {offsets = [0, 96], sizes = [2, 32], strides = [1, 1]} : vector<2x128xf32> to vector<2x32xf32>
    %31 = arith.addf %29, %30 : vector<2x32xf32>
    %32 = vector.broadcast %8 : vector<1x32xf32> to vector<2x32xf32>
    %33 = arith.subf %32, %18 : vector<2x32xf32>
    %34 = math.exp %33 : vector<2x32xf32>
    %35 = arith.addf %31, %34 : vector<2x32xf32>
    %36 = tpu.reciprocal %35 {approx = true} : vector<2x32xf32> -> vector<2x32xf32>
    %37 = tpu.concatenate %36, %36, %36, %36 in 1 : vector<2x32xf32>, vector<2x32xf32>, vector<2x32xf32>, vector<2x32xf32> -> vector<2x128xf32>
    %38 = arith.mulf %23, %6 : vector<2x2x128xf32>
    %cst_7 = arith.constant dense<0.000000e+00> : vector<2x128xf32>
    %39 = vector.multi_reduction <add>, %38, %cst_7 [1] : vector<2x2x128xf32> to vector<2x128xf32>
    %40 = arith.mulf %39, %37 : vector<2x128xf32>
    %c0_8 = arith.constant 0 : index
    %c0_9 = arith.constant 0 : index
    %41 = vector.load %arg7[%c0_8, %c0_9] : memref<16x128xf32, #tpu.memory_space<vmem>>, vector<1x32xf32>
    %c2 = arith.constant 2 : index
    %c0_10 = arith.constant 0 : index
    %42 = vector.load %arg7[%c2, %c0_10] : memref<16x128xf32, #tpu.memory_space<vmem>>, vector<1x32xf32>
    %43 = arith.mulf %34, %36 : vector<2x32xf32>
    %44 = vector.broadcast %42 : vector<1x32xf32> to vector<2x32xf32>
    %45 = arith.mulf %43, %44 : vector<2x32xf32>
    %46 = vector.broadcast %41 : vector<1x32xf32> to vector<2x32xf32>
    %47 = arith.addf %45, %46 : vector<2x32xf32>
    %cst_11 = arith.constant 0.000000e+00 : f32
    %48 = vector.broadcast %cst_11 : f32 to vector<2x96xf32>
    %49 = tpu.concatenate %47, %48 in 1 : vector<2x32xf32>, vector<2x96xf32> -> vector<2x128xf32>
    %50 = arith.addf %40, %49 : vector<2x128xf32>
    %c3 = arith.constant 3 : index
    %c0_12 = arith.constant 0 : index
    %51 = vector.load %arg7[%c3, %c0_12] : memref<16x128xf32, #tpu.memory_space<vmem>>, vector<1x32xf32>
    %c4 = arith.constant 4 : index
    %c0_13 = arith.constant 0 : index
    %52 = vector.load %arg7[%c4, %c0_13] : memref<16x128xf32, #tpu.memory_space<vmem>>, vector<1x32xf32>
    %c5 = arith.constant 5 : index
    %c0_14 = arith.constant 0 : index
    %53 = vector.load %arg7[%c5, %c0_14] : memref<16x128xf32, #tpu.memory_space<vmem>>, vector<1x32xf32>
    %54 = arith.truncf %50 : vector<2x128xf32> to vector<2x128xbf16>
    %c0_15 = arith.constant 0 : index
    %c0_16 = arith.constant 0 : index
    %55 = vector.load %arg3[%c0_15, %c0_16] : memref<128x32xbf16, #tpu.memory_space<vmem>>, vector<128x32xbf16>
    %cst_17 = arith.constant dense<0.000000e+00> : vector<2x32xf32>
    %56 = tpu.matmul %54, %55, %cst_17 {dimension_numbers = #tpu.dot_dimension_numbers<[1], [0], [0], [1], [0, 0, 1, 1], [], []>} : vector<2x128xbf16>, vector<128x32xbf16>, vector<2x32xf32> -> vector<2x32xf32>
    %57 = vector.broadcast %51 : vector<1x32xf32> to vector<2x32xf32>
    %58 = arith.addf %56, %57 : vector<2x32xf32>
    %cst_18 = arith.constant dense<0.000000e+00> : vector<2xf32>
    %59 = vector.multi_reduction <add>, %58, %cst_18 [1] : vector<2x32xf32> to vector<2xf32>
    %60 = vector.shape_cast %59 : vector<2xf32> to vector<2x1xf32>
    %cst_19 = arith.constant 3.200000e+01 : f32
    %61 = vector.broadcast %cst_19 : f32 to vector<2x1xf32>
    %62 = arith.divf %60, %61 : vector<2x1xf32>
    %63 = vector.broadcast %62 : vector<2x1xf32> to vector<2x32xf32>
    %64 = arith.subf %58, %63 : vector<2x32xf32>
    %65 = arith.mulf %64, %64 : vector<2x32xf32>
    %cst_20 = arith.constant dense<0.000000e+00> : vector<2xf32>
    %66 = vector.multi_reduction <add>, %65, %cst_20 [1] : vector<2x32xf32> to vector<2xf32>
    %67 = vector.shape_cast %66 : vector<2xf32> to vector<2x1xf32>
    %cst_21 = arith.constant 3.200000e+01 : f32
    %68 = vector.broadcast %cst_21 : f32 to vector<2x1xf32>
    %69 = arith.divf %67, %68 : vector<2x1xf32>
    %70 = vector.broadcast %62 : vector<2x1xf32> to vector<2x32xf32>
    %71 = arith.subf %58, %70 : vector<2x32xf32>
    %cst_22 = arith.constant 9.99999974E-6 : f32
    %72 = vector.broadcast %cst_22 : f32 to vector<2x1xf32>
    %73 = arith.addf %69, %72 : vector<2x1xf32>
    %74 = math.rsqrt %73 : vector<2x1xf32>
    %75 = vector.broadcast %74 : vector<2x1xf32> to vector<2x32xf32>
    %76 = arith.mulf %71, %75 : vector<2x32xf32>
    %77 = vector.broadcast %52 : vector<1x32xf32> to vector<2x32xf32>
    %78 = arith.mulf %76, %77 : vector<2x32xf32>
    %79 = vector.broadcast %53 : vector<1x32xf32> to vector<2x32xf32>
    %80 = arith.addf %78, %79 : vector<2x32xf32>
    %c6 = arith.constant 6 : index
    %c0_23 = arith.constant 0 : index
    %81 = vector.load %arg7[%c6, %c0_23] : memref<16x128xf32, #tpu.memory_space<vmem>>, vector<1x64xf32>
    %c7 = arith.constant 7 : index
    %c0_24 = arith.constant 0 : index
    %82 = vector.load %arg7[%c7, %c0_24] : memref<16x128xf32, #tpu.memory_space<vmem>>, vector<1x32xf32>
    %83 = arith.truncf %80 : vector<2x32xf32> to vector<2x32xbf16>
    %c0_25 = arith.constant 0 : index
    %c0_26 = arith.constant 0 : index
    %84 = vector.load %arg4[%c0_25, %c0_26] : memref<32x64xbf16, #tpu.memory_space<vmem>>, vector<32x64xbf16>
    %cst_27 = arith.constant dense<0.000000e+00> : vector<2x64xf32>
    %85 = tpu.matmul %83, %84, %cst_27 {dimension_numbers = #tpu.dot_dimension_numbers<[1], [0], [0], [1], [0, 0, 1, 1], [], []>} : vector<2x32xbf16>, vector<32x64xbf16>, vector<2x64xf32> -> vector<2x64xf32>
    %86 = vector.broadcast %81 : vector<1x64xf32> to vector<2x64xf32>
    %87 = arith.addf %85, %86 : vector<2x64xf32>
    %cst_28 = arith.constant 0.000000e+00 : f32
    %88 = vector.broadcast %cst_28 : f32 to vector<2x64xf32>
    %89 = arith.maximumf %87, %88 : vector<2x64xf32>
    %90 = arith.truncf %89 : vector<2x64xf32> to vector<2x64xbf16>
    %c0_29 = arith.constant 0 : index
    %c0_30 = arith.constant 0 : index
    %91 = vector.load %arg5[%c0_29, %c0_30] : memref<64x32xbf16, #tpu.memory_space<vmem>>, vector<64x32xbf16>
    %cst_31 = arith.constant dense<0.000000e+00> : vector<2x32xf32>
    %92 = tpu.matmul %90, %91, %cst_31 {dimension_numbers = #tpu.dot_dimension_numbers<[1], [0], [0], [1], [0, 0, 1, 1], [], []>} : vector<2x64xbf16>, vector<64x32xbf16>, vector<2x32xf32> -> vector<2x32xf32>
    %93 = vector.broadcast %82 : vector<1x32xf32> to vector<2x32xf32>
    %94 = arith.addf %92, %93 : vector<2x32xf32>
    %95 = arith.addf %80, %94 : vector<2x32xf32>
    %cst_32 = arith.constant dense<0.000000e+00> : vector<2xf32>
    %96 = vector.multi_reduction <add>, %95, %cst_32 [1] : vector<2x32xf32> to vector<2xf32>
    %97 = vector.shape_cast %96 : vector<2xf32> to vector<2x1xf32>
    %cst_33 = arith.constant 3.200000e+01 : f32
    %98 = vector.broadcast %cst_33 : f32 to vector<2x1xf32>
    %99 = arith.divf %97, %98 : vector<2x1xf32>
    %100 = vector.broadcast %99 : vector<2x1xf32> to vector<2x32xf32>
    %101 = arith.subf %95, %100 : vector<2x32xf32>
    %102 = arith.mulf %101, %101 : vector<2x32xf32>
    %cst_34 = arith.constant dense<0.000000e+00> : vector<2xf32>
    %103 = vector.multi_reduction <add>, %102, %cst_34 [1] : vector<2x32xf32> to vector<2xf32>
    %104 = vector.shape_cast %103 : vector<2xf32> to vector<2x1xf32>
    %cst_35 = arith.constant 3.200000e+01 : f32
    %105 = vector.broadcast %cst_35 : f32 to vector<2x1xf32>
    %106 = arith.divf %104, %105 : vector<2x1xf32>
    %107 = vector.broadcast %99 : vector<2x1xf32> to vector<2x32xf32>
    %108 = arith.subf %95, %107 : vector<2x32xf32>
    %cst_36 = arith.constant 9.99999974E-6 : f32
    %109 = vector.broadcast %cst_36 : f32 to vector<2x1xf32>
    %110 = arith.addf %106, %109 : vector<2x1xf32>
    %111 = math.rsqrt %110 : vector<2x1xf32>
    %112 = vector.broadcast %111 : vector<2x1xf32> to vector<2x32xf32>
    %113 = arith.mulf %108, %112 : vector<2x32xf32>
    %c8 = arith.constant 8 : index
    %c0_37 = arith.constant 0 : index
    %114 = vector.load %arg7[%c8, %c0_37] : memref<16x128xf32, #tpu.memory_space<vmem>>, vector<1x24xf32>
    %115 = arith.truncf %113 : vector<2x32xf32> to vector<2x32xbf16>
    %c0_38 = arith.constant 0 : index
    %c0_39 = arith.constant 0 : index
    %116 = vector.load %arg6[%c0_38, %c0_39] : memref<32x24xbf16, #tpu.memory_space<vmem>>, vector<32x24xbf16>
    %cst_40 = arith.constant dense<0.000000e+00> : vector<2x24xf32>
    %117 = tpu.matmul %115, %116, %cst_40 {dimension_numbers = #tpu.dot_dimension_numbers<[1], [0], [0], [1], [0, 0, 1, 1], [], []>} : vector<2x32xbf16>, vector<32x24xbf16>, vector<2x24xf32> -> vector<2x24xf32>
    %118 = vector.broadcast %114 : vector<1x24xf32> to vector<2x24xf32>
    %119 = arith.addf %117, %118 : vector<2x24xf32>
    %120 = vector.shape_cast %119 : vector<2x24xf32> to vector<2x1x24xf32>
    %c0_41 = arith.constant 0 : index
    %c0_42 = arith.constant 0 : index
    %c0_43 = arith.constant 0 : index
    %121 = vector.load %arg8[%c0_41, %c0_42, %c0_43] : memref<2x1x24xf32, #tpu.memory_space<vmem>>, vector<2x1x24xf32>
    tpu.vector_store %arg8[%c0_41, %c0_42, %c0_43], %120 {strides = array<i32>} : memref<2x1x24xf32, #tpu.memory_space<vmem>>, vector<2x1x24xf32>,
    return
  }
  func.func @transform_0(%arg0: i32) -> (i32, i32, i32) {
    %c0_i32 = arith.constant 0 : i32
    %c0_i32_0 = arith.constant 0 : i32
    %c0_i32_1 = arith.constant 0 : i32
    return %arg0, %c0_i32, %c0_i32_0 : i32, i32, i32
  }
  func.func @transform_1(%arg0: i32) -> (i32, i32) {
    %c0_i32 = arith.constant 0 : i32
    %c0_i32_0 = arith.constant 0 : i32
    %c0_i32_1 = arith.constant 0 : i32
    return %c0_i32, %c0_i32_0 : i32, i32
  }
  func.func @transform_2(%arg0: i32) -> (i32, i32) {
    %c0_i32 = arith.constant 0 : i32
    %c0_i32_0 = arith.constant 0 : i32
    %c0_i32_1 = arith.constant 0 : i32
    return %c0_i32, %c0_i32_0 : i32, i32
  }
  func.func @transform_3(%arg0: i32) -> (i32, i32) {
    %c0_i32 = arith.constant 0 : i32
    %c0_i32_0 = arith.constant 0 : i32
    %c0_i32_1 = arith.constant 0 : i32
    return %c0_i32, %c0_i32_0 : i32, i32
  }
  func.func @transform_4(%arg0: i32) -> (i32, i32) {
    %c0_i32 = arith.constant 0 : i32
    %c0_i32_0 = arith.constant 0 : i32
    %c0_i32_1 = arith.constant 0 : i32
    return %c0_i32, %c0_i32_0 : i32, i32
  }
  func.func @transform_5(%arg0: i32) -> (i32, i32) {
    %c0_i32 = arith.constant 0 : i32
    %c0_i32_0 = arith.constant 0 : i32
    %c0_i32_1 = arith.constant 0 : i32
    return %c0_i32, %c0_i32_0 : i32, i32
  }
  func.func @transform_6(%arg0: i32) -> (i32, i32) {
    %c0_i32 = arith.constant 0 : i32
    %c0_i32_0 = arith.constant 0 : i32
    %c0_i32_1 = arith.constant 0 : i32
    return %c0_i32, %c0_i32_0 : i32, i32
  }
  func.func @transform_7(%arg0: i32) -> (i32, i32, i32) {
    %c0_i32 = arith.constant 0 : i32
    %c0_i32_0 = arith.constant 0 : i32
    %c0_i32_1 = arith.constant 0 : i32
    return %arg0, %c0_i32, %c0_i32_0 : i32, i32, i32
  }
}

</mosaic_0001>

<llo_original>
// kernel: transformer_alpha_classifier.1
$region0: #{transformer_alpha_classifier.1}
  #allocation0 [shape = 'u32[]', space=smem, size = 0x4, offset = 0x4, fixed_abs, tag = 'smem constant byte address 0x4 - core index']
  #allocation1 [shape = 'u32[72,128]{1,0:T(1,128)}', space=vmem, size = 0x9000, scoped, tag = 'internal scratch']
  %s0 = inlined_call_operand.vmem [shape: f32[4,2,128], index: 0, kind: input, shape index: {}]
  %s1 = inlined_call_operand.vmem [shape: bf16[128,256], index: 1, kind: input, shape index: {}]
  %s2 = inlined_call_operand.vmem [shape: bf16[128,32], index: 2, kind: input, shape index: {}]
  %s3 = inlined_call_operand.vmem [shape: bf16[32,64], index: 3, kind: input, shape index: {}]
  %s4 = inlined_call_operand.vmem [shape: bf16[64,32], index: 4, kind: input, shape index: {}]
  %s5 = inlined_call_operand.vmem [shape: bf16[32,24], index: 5, kind: input, shape index: {}]
  %s6 = inlined_call_operand.vmem [shape: f32[16,128], index: 6, kind: input, shape index: {}]
  %s7 = inlined_call_operand.hbm [shape: f32[4,1,24], index: 7, kind: output, shape index: {}]
  %s8 = sld [smem:[#allocation0]]
  $region61: #{transformer_alpha_classifier.1} parent=0
    _
  %s10 = ssub.s32 1, %s8
  %s11 = scalar_select 0, %s10, %s8
  $region1: #{transformer_alpha_classifier.1} parent=0
    #allocation2 [shape = 'u8[2048]{0}', space=vmem, size = 0x800, scoped, tag = 'output window, operand 0']
    #allocation3 [shape = 's32[2]{0}', space=sflag, size = 0x8, scoped, tag = 'scoped memory for transformer_alpha_classifier.1']
    %12 = vsyncpa [#allocation3], 0
    %s13 = scalar_lea.sflag [#allocation3], 1
    %14 = vsyncpa %s13, 0
    loop: start=0, step=1, limit=4
    $region2: #{transformer_alpha_classifier.1} parent=1 // loop_pre_header
      _
    $region3: #{transformer_alpha_classifier.1} parent=1 // loop_header
      %s16 = sphi 0, %s20
      %p17 = scmp.ge.s32.totalorder %s16, 4
      %s26 = sphi 0, %s28
      %s29 = sphi 0, %s26
      %s30 = sphi 0, %s29
      %s46 = sphi 0, %s30
      %s50 = sphi 0, %s50
      %s52 = sphi 0, %s50
      %s53 = sphi 0, %s52
      %s67 = sphi 0, %s53
      %s71 = sphi 0, %s71
      %s73 = sphi 0, %s71
      %s74 = sphi 0, %s73
      %s88 = sphi 0, %s74
      %s92 = sphi 0, %s92
      %s94 = sphi 0, %s92
      %s95 = sphi 0, %s94
      %s109 = sphi 0, %s95
      %s113 = sphi 0, %s113
      %s115 = sphi 0, %s113
      %s116 = sphi 0, %s115
      %s130 = sphi 0, %s116
      %s134 = sphi 0, %s134
      %s136 = sphi 0, %s134
      %s137 = sphi 0, %s136
      %s151 = sphi 0, %s137
      %s155 = sphi 0, %s155
      %s157 = sphi 0, %s155
      %s158 = sphi 0, %s157
      %s172 = sphi 0, %s158
      %s178 = sphi 0, %s180
      %s181 = sphi 0, %s178
      %s182 = sphi 0, %s181
      %s198 = sphi 0, %s182
    $region4: #{transformer_alpha_classifier.1} parent=1 // loop_header_branch
      %19 = sbr.rel (%p17) target = $region8
    $region5: #{transformer_alpha_classifier.1} parent=1 // loop_body
      %s21 = ssub.s32 %s16, 1
      %s22 = ssub.s32 %s16, 2
      %s23 = sadd.s32 %s16, 1
      %s24 = ssub.s32 %s16, %s23
      %p25 = scmp.eq.s32.totalorder %s24, 0
      %s27 = sadd.s32 %s26, 1
      %s28 = scalar_select %p25, %s26, %s27
      %p31 = pneg %p25
      %p32 = scmp.eq.s32.totalorder %s16, 1
      %p33 = por %p31, %p32
      %p34 = scmp.ne.s32.totalorder %s26, %s29
      %p35 = scmp.eq.s32.totalorder %s16, 0
      %p36 = por %p34, %p35
      %p37 = scmp.ne.s32.totalorder %s26, %s29
      %p38 = scmp.eq.s32.totalorder %s21, 1
      %p39 = por %p37, %p38
      %p40 = scmp.ne.s32.totalorder %s29, %s30
      %p41 = scmp.eq.s32.totalorder %s21, 0
      %p42 = por %p40, %p41
      %p43 = scmp.ne.s32.totalorder %s29, %s30
      %p44 = scmp.eq.s32.totalorder %s22, 1
      %p45 = por %p43, %p44
      %p47 = scmp.ne.s32.totalorder %s30, %s46
      %p48 = scmp.eq.s32.totalorder %s22, 0
      %p49 = por %p47, %p48
      %s51 = sadd.s32 %s50, 1
      %p54 = scmp.eq.s32.totalorder %s16, 1
      %p55 = scmp.ne.s32.totalorder %s50, %s52
      %p56 = scmp.eq.s32.totalorder %s16, 0
      %p57 = por %p55, %p56
      %p58 = scmp.ne.s32.totalorder %s50, %s52
      %p59 = scmp.eq.s32.totalorder %s21, 1
      %p60 = por %p58, %p59
      %p61 = scmp.ne.s32.totalorder %s52, %s53
      %p62 = scmp.eq.s32.totalorder %s21, 0
      %p63 = por %p61, %p62
      %p64 = scmp.ne.s32.totalorder %s52, %s53
      %p65 = scmp.eq.s32.totalorder %s22, 1
      %p66 = por %p64, %p65
      %p68 = scmp.ne.s32.totalorder %s53, %s67
      %p69 = scmp.eq.s32.totalorder %s22, 0
      %p70 = por %p68, %p69
      %s72 = sadd.s32 %s71, 1
      %p75 = scmp.eq.s32.totalorder %s16, 1
      %p76 = scmp.ne.s32.totalorder %s71, %s73
      %p77 = scmp.eq.s32.totalorder %s16, 0
      %p78 = por %p76, %p77
      %p79 = scmp.ne.s32.totalorder %s71, %s73
      %p80 = scmp.eq.s32.totalorder %s21, 1
      %p81 = por %p79, %p80
      %p82 = scmp.ne.s32.totalorder %s73, %s74
      %p83 = scmp.eq.s32.totalorder %s21, 0
      %p84 = por %p82, %p83
      %p85 = scmp.ne.s32.totalorder %s73, %s74
      %p86 = scmp.eq.s32.totalorder %s22, 1
      %p87 = por %p85, %p86
      %p89 = scmp.ne.s32.totalorder %s74, %s88
      %p90 = scmp.eq.s32.totalorder %s22, 0
      %p91 = por %p89, %p90
      %s93 = sadd.s32 %s92, 1
      %p96 = scmp.eq.s32.totalorder %s16, 1
      %p97 = scmp.ne.s32.totalorder %s92, %s94
      %p98 = scmp.eq.s32.totalorder %s16, 0
      %p99 = por %p97, %p98
      %p100 = scmp.ne.s32.totalorder %s92, %s94
      %p101 = scmp.eq.s32.totalorder %s21, 1
      %p102 = por %p100, %p101
      %p103 = scmp.ne.s32.totalorder %s94, %s95
      %p104 = scmp.eq.s32.totalorder %s21, 0
      %p105 = por %p103, %p104
      %p106 = scmp.ne.s32.totalorder %s94, %s95
      %p107 = scmp.eq.s32.totalorder %s22, 1
      %p108 = por %p106, %p107
      %p110 = scmp.ne.s32.totalorder %s95, %s109
      %p111 = scmp.eq.s32.totalorder %s22, 0
      %p112 = por %p110, %p111
      %s114 = sadd.s32 %s113, 1
      %p117 = scmp.eq.s32.totalorder %s16, 1
      %p118 = scmp.ne.s32.totalorder %s113, %s115
      %p119 = scmp.eq.s32.totalorder %s16, 0
      %p120 = por %p118, %p119
      %p121 = scmp.ne.s32.totalorder %s113, %s115
      %p122 = scmp.eq.s32.totalorder %s21, 1
      %p123 = por %p121, %p122
      %p124 = scmp.ne.s32.totalorder %s115, %s116
      %p125 = scmp.eq.s32.totalorder %s21, 0
      %p126 = por %p124, %p125
      %p127 = scmp.ne.s32.totalorder %s115, %s116
      %p128 = scmp.eq.s32.totalorder %s22, 1
      %p129 = por %p127, %p128
      %p131 = scmp.ne.s32.totalorder %s116, %s130
      %p132 = scmp.eq.s32.totalorder %s22, 0
      %p133 = por %p131, %p132
      %s135 = sadd.s32 %s134, 1
      %p138 = scmp.eq.s32.totalorder %s16, 1
      %p139 = scmp.ne.s32.totalorder %s134, %s136
      %p140 = scmp.eq.s32.totalorder %s16, 0
      %p141 = por %p139, %p140
      %p142 = scmp.ne.s32.totalorder %s134, %s136
      %p143 = scmp.eq.s32.totalorder %s21, 1
      %p144 = por %p142, %p143
      %p145 = scmp.ne.s32.totalorder %s136, %s137
      %p146 = scmp.eq.s32.totalorder %s21, 0
      %p147 = por %p145, %p146
      %p148 = scmp.ne.s32.totalorder %s136, %s137
      %p149 = scmp.eq.s32.totalorder %s22, 1
      %p150 = por %p148, %p149
      %p152 = scmp.ne.s32.totalorder %s137, %s151
      %p153 = scmp.eq.s32.totalorder %s22, 0
      %p154 = por %p152, %p153
      %s156 = sadd.s32 %s155, 1
      %p159 = scmp.eq.s32.totalorder %s16, 1
      %p160 = scmp.ne.s32.totalorder %s155, %s157
      %p161 = scmp.eq.s32.totalorder %s16, 0
      %p162 = por %p160, %p161
      %p163 = scmp.ne.s32.totalorder %s155, %s157
      %p164 = scmp.eq.s32.totalorder %s21, 1
      %p165 = por %p163, %p164
      %p166 = scmp.ne.s32.totalorder %s157, %s158
      %p167 = scmp.eq.s32.totalorder %s21, 0
      %p168 = por %p166, %p167
      %p169 = scmp.ne.s32.totalorder %s157, %s158
      %p170 = scmp.eq.s32.totalorder %s22, 1
      %p171 = por %p169, %p170
      %p173 = scmp.ne.s32.totalorder %s158, %s172
      %p174 = scmp.eq.s32.totalorder %s22, 0
      %p175 = por %p173, %p174
      %s176 = ssub.s32 %s16, %s23
      %p177 = scmp.eq.s32.totalorder %s176, 0
      %s179 = sadd.s32 %s178, 1
      %s180 = scalar_select %p177, %s178, %s179
      %p183 = pneg %p177
      %p184 = scmp.eq.s32.totalorder %s16, 1
      %p185 = por %p183, %p184
      %p186 = scmp.ne.s32.totalorder %s178, %s181
      %p187 = scmp.eq.s32.totalorder %s16, 0
      %p188 = por %p186, %p187
      %p189 = scmp.ne.s32.totalorder %s178, %s181
      %p190 = scmp.eq.s32.totalorder %s21, 1
      %p191 = por %p189, %p190
      %p192 = scmp.ne.s32.totalorder %s181, %s182
      %p193 = scmp.eq.s32.totalorder %s21, 0
      %p194 = por %p192, %p193
      %p195 = scmp.ne.s32.totalorder %s181, %s182
      %p196 = scmp.eq.s32.totalorder %s22, 1
      %p197 = por %p195, %p196
      %p199 = scmp.ne.s32.totalorder %s182, %s198
      %p200 = scmp.eq.s32.totalorder %s22, 0
      %p201 = por %p199, %p200
      %p202 = scmp.le.s32.totalorder 1, %s16
      %p203 = scmp.lt.s32.totalorder %s16, 3
      %p204 = pnand %p202, %p203
      %p205 = pneg %p204
      // Predicated region
      $region9: #{transformer_alpha_classifier.1} parent=5 // pred_check
        _
      $region10: #{transformer_alpha_classifier.1} parent=5 // pred_check_branch
        %207 = sbr.rel (%p204) target = $region12
      $region11: #{transformer_alpha_classifier.1} parent=5 // pred_region
        %s208 = ssub.s32 %s16, 1
        // Predicated region
        $region13: #{transformer_alpha_classifier.1} parent=11 // pred_check
          %p209 = pneg %p63
        $region14: #{transformer_alpha_classifier.1} parent=11 // pred_check_branch
          %211 = sbr.rel (%p209) target = $region16
        $region15: #{transformer_alpha_classifier.1} parent=11 // pred_region
          _
        $region16: #{transformer_alpha_classifier.1} parent=11 // pred_fallthru
          _
        // Predicated region
        $region17: #{transformer_alpha_classifier.1} parent=11 // pred_check
          %p212 = pneg %p84
        $region18: #{transformer_alpha_classifier.1} parent=11 // pred_check_branch
          %214 = sbr.rel (%p212) target = $region20
        $region19: #{transformer_alpha_classifier.1} parent=11 // pred_region
          _
        $region20: #{transformer_alpha_classifier.1} parent=11 // pred_fallthru
          _
        // Predicated region
        $region21: #{transformer_alpha_classifier.1} parent=11 // pred_check
          %p215 = pneg %p105
        $region22: #{transformer_alpha_classifier.1} parent=11 // pred_check_branch
          %217 = sbr.rel (%p215) target = $region24
        $region23: #{transformer_alpha_classifier.1} parent=11 // pred_region
          _
        $region24: #{transformer_alpha_classifier.1} parent=11 // pred_fallthru
          _
        // Predicated region
        $region25: #{transformer_alpha_classifier.1} parent=11 // pred_check
          %p218 = pneg %p126
        $region26: #{transformer_alpha_classifier.1} parent=11 // pred_check_branch
          %220 = sbr.rel (%p218) target = $region28
        $region27: #{transformer_alpha_classifier.1} parent=11 // pred_region
          _
        $region28: #{transformer_alpha_classifier.1} parent=11 // pred_fallthru
          _
        // Predicated region
        $region29: #{transformer_alpha_classifier.1} parent=11 // pred_check
          %p221 = pneg %p147
        $region30: #{transformer_alpha_classifier.1} parent=11 // pred_check_branch
          %223 = sbr.rel (%p221) target = $region32
        $region31: #{transformer_alpha_classifier.1} parent=11 // pred_region
          _
        $region32: #{transformer_alpha_classifier.1} parent=11 // pred_fallthru
          _
        // Predicated region
        $region33: #{transformer_alpha_classifier.1} parent=11 // pred_check
          %p224 = pneg %p168
        $region34: #{transformer_alpha_classifier.1} parent=11 // pred_check_branch
          %226 = sbr.rel (%p224) target = $region36
        $region35: #{transformer_alpha_classifier.1} parent=11 // pred_region
          _
        $region36: #{transformer_alpha_classifier.1} parent=11 // pred_fallthru
          _
      $region12: #{transformer_alpha_classifier.1} parent=5 // pred_fallthru
        _
      %p227 = scmp.lt.s32.totalorder %s16, 2
      // Predicated region
      $region37: #{transformer_alpha_classifier.1} parent=5 // pred_check
        %p228 = pneg %p227
      $region38: #{transformer_alpha_classifier.1} parent=5 // pred_check_branch
        %230 = sbr.rel (%p228) target = $region40
      $region39: #{transformer_alpha_classifier.1} parent=5 // pred_region
        // Predicated region
        $region41: #{transformer_alpha_classifier.1} parent=39 // pred_check
          %p231 = pneg %p36
        $region42: #{transformer_alpha_classifier.1} parent=39 // pred_check_branch
          %233 = sbr.rel (%p231) target = $region44
        $region43: #{transformer_alpha_classifier.1} parent=39 // pred_region
          %s234 = smul.u32 2, %s16
          %p235 = scmp.lt.s32.totalorder %s234, 3
          %s236 = scalar_select %p235, %s234, 3
          %s237 = smul.addr %s236, 2
          %s238 = scalar_lea.vmem %s0, %s237
          %s239 = smul.u32 2, %s16
        $region44: #{transformer_alpha_classifier.1} parent=39 // pred_fallthru
          _
      $region40: #{transformer_alpha_classifier.1} parent=5 // pred_fallthru
        _
      %p240 = scmp.le.s32.totalorder 1, %s16
      %p241 = scmp.lt.s32.totalorder %s16, 3
      %p242 = pnand %p240, %p241
      %p243 = pneg %p242
      // Predicated region
      $region45: #{transformer_alpha_classifier.1} parent=5 // pred_check
        _
      $region46: #{transformer_alpha_classifier.1} parent=5 // pred_check_branch
        %245 = sbr.rel (%p242) target = $region48
      $region47: #{transformer_alpha_classifier.1} parent=5 // pred_region
        %s246 = ssub.s32 %s16, 1
        %s247 = smul.u32 2, %s21
        %p248 = scmp.lt.s32.totalorder %s247, 3
        %s249 = scalar_select %p248, %s247, 3
        %s250 = smul.addr %s249, 2
        %s251 = scalar_lea.vmem %s0, %s250
        %p252 = pneg %p42
        %p253 = pneg %p39
        %p254 = pneg %p63
        %p255 = pneg %p60
        %p256 = pneg %p84
        %p257 = pneg %p81
        %p258 = pneg %p105
        %p259 = pneg %p102
        %p260 = pneg %p126
        %p261 = pneg %p123
        %p262 = pneg %p147
        %p263 = pneg %p144
        %p264 = pneg %p168
        %p265 = pneg %p165
        %p266 = pneg %p194
        %p267 = pneg %p191
        %s268 = sand.u32 %s181, 1
        %s269 = scalar_lea.sflag [#allocation3], %s268
        %s270 = sand.u32 %s181, 1
        %s271 = smul.addr %s270, 2
        %s272 = scalar_lea.vmem [#allocation2], %s271
        %s273 = smul.u32 2, %s21
        %p274 = scmp.lt.s32.totalorder %s273, 3
        %s275 = scalar_select %p274, %s273, 3
        %s276 = smul.addr %s275, 2
        %s277 = scalar_lea.vmem %s0, %s276
        %s278 = smul.u32 2, %s21
        %s279 = smul.u32 2, %s21
        %v281 = vld [vmem:[%s277] sm:$0x3]
        %v282 = vld [vmem:[%s277 + $0x2] sm:$0x3]
        %285 = vst [vmem:[#allocation1] ss:$4 sm:$0xff] %v281
        %s286 = scalar_lea.vmem [#allocation1], 1
        %287 = vst [vmem:[%s286] ss:$4 sm:$0xff] %v282
        %v288 = vld.sshfl [vmem:[#allocation1] sm:$0xff pattern:$0x73625140]
        %v290 = vpack.c.bf16 %v288, %v288
        %v291 = vld [vmem:[%s1] sm:$0xff]
        %v292 = vld [vmem:[%s1 + $0x8] sm:$0xff]
        %v293 = vld [vmem:[%s1 + $0x10] sm:$0xff]
        %v294 = vld [vmem:[%s1 + $0x18] sm:$0xff]
        %v295 = vld [vmem:[%s1 + $0x20] sm:$0xff]
        %v296 = vld [vmem:[%s1 + $0x28] sm:$0xff]
        %v297 = vld [vmem:[%s1 + $0x30] sm:$0xff]
        %v298 = vld [vmem:[%s1 + $0x38] sm:$0xff]
        %v299 = vld [vmem:[%s1 + $0x40] sm:$0xff]
        %v300 = vld [vmem:[%s1 + $0x48] sm:$0xff]
        %v301 = vld [vmem:[%s1 + $0x50] sm:$0xff]
        %v302 = vld [vmem:[%s1 + $0x58] sm:$0xff]
        %v303 = vld [vmem:[%s1 + $0x60] sm:$0xff]
        %v304 = vld [vmem:[%s1 + $0x68] sm:$0xff]
        %v305 = vld [vmem:[%s1 + $0x70] sm:$0xff]
        %v306 = vld [vmem:[%s1 + $0x78] sm:$0xff]
        %v323 = vunpack.c.l.b16 %v291
        %v324 = vunpack.c.h.b16 %v291
        %v325 = vunpack.c.l.b16 %v292
        %v326 = vunpack.c.h.b16 %v292
        %v327 = vunpack.c.l.b16 %v293
        %v328 = vunpack.c.h.b16 %v293
        %v329 = vunpack.c.l.b16 %v294
        %v330 = vunpack.c.h.b16 %v294
        %v331 = vunpack.c.l.b16 %v295
        %v332 = vunpack.c.h.b16 %v295
        %v333 = vunpack.c.l.b16 %v296
        %v334 = vunpack.c.h.b16 %v296
        %v335 = vunpack.c.l.b16 %v297
        %v336 = vunpack.c.h.b16 %v297
        %v337 = vunpack.c.l.b16 %v298
        %v338 = vunpack.c.h.b16 %v298
        %v339 = vunpack.c.l.b16 %v299
        %v340 = vunpack.c.h.b16 %v299
        %v341 = vunpack.c.l.b16 %v300
        %v342 = vunpack.c.h.b16 %v300
        %v343 = vunpack.c.l.b16 %v301
        %v344 = vunpack.c.h.b16 %v301
        %v345 = vunpack.c.l.b16 %v302
        %v346 = vunpack.c.h.b16 %v302
        %v347 = vunpack.c.l.b16 %v303
        %v348 = vunpack.c.h.b16 %v303
        %v349 = vunpack.c.l.b16 %v304
        %v350 = vunpack.c.h.b16 %v304
        %v351 = vunpack.c.l.b16 %v305
        %v352 = vunpack.c.h.b16 %v305
        %v353 = vunpack.c.l.b16 %v306
        %v354 = vunpack.c.h.b16 %v306
        %v355 = vpack.c.b16 %v325, %v323
        %v356 = vpack.c.b16 %v326, %v324
        %v357 = vpack.c.b16 %v329, %v327
        %v358 = vpack.c.b16 %v330, %v328
        %v359 = vpack.c.b16 %v333, %v331
        %v360 = vpack.c.b16 %v334, %v332
        %v361 = vpack.c.b16 %v337, %v335
        %v362 = vpack.c.b16 %v338, %v336
        %v363 = vpack.c.b16 %v341, %v339
        %v364 = vpack.c.b16 %v342, %v340
        %v365 = vpack.c.b16 %v345, %v343
        %v366 = vpack.c.b16 %v346, %v344
        %v367 = vpack.c.b16 %v349, %v347
        %v368 = vpack.c.b16 %v350, %v348
        %v369 = vpack.c.b16 %v353, %v351
        %v370 = vpack.c.b16 %v354, %v352
        %387 = vmatpush.bf16.msra.mxu0 %v369
        %388 = vmatpush.bf16.msra.mxu0 %v367
        %389 = vmatpush.bf16.msra.mxu0 %v365
        %390 = vmatpush.bf16.msra.mxu0 %v363
        %391 = vmatpush.bf16.msra.mxu0 %v361
        %392 = vmatpush.bf16.msra.mxu0 %v359
        %393 = vmatpush.bf16.msra.mxu0 %v357
        %394 = vmatpush.bf16.msra.mxu0 %v355
        %395 = vmatmul.bf16.gmra.mxu0 %v290
        %v396 = vpop.f32.mrf.mxu0
        %v397 = vadd.f32 0.0, %v396
        %v398 = vpop.f32.mrf.mxu0
        %399 = vdwg.mxu0
        %400 = vmatpush.bf16.msra.mxu0 %v370
        %401 = vmatpush.bf16.msra.mxu0 %v368
        %402 = vmatpush.bf16.msra.mxu0 %v366
        %403 = vmatpush.bf16.msra.mxu0 %v364
        %404 = vmatpush.bf16.msra.mxu0 %v362
        %405 = vmatpush.bf16.msra.mxu0 %v360
        %406 = vmatpush.bf16.msra.mxu0 %v358
        %407 = vmatpush.bf16.msra.mxu0 %v356
        %408 = vmatmul.bf16.gmra.mxu0 %v290
        %v409 = vpop.f32.mrf.mxu0
        %v410 = vadd.f32 0.0, %v409
        %v411 = vpop.f32.mrf.mxu0
        %412 = vdwg.mxu0
        %v415 = vrot.slane %v410, 6
        %vm416 = vcmask 1041408
        %v417 = vsel %vm416, %v397, %v415
        %vm418 = vcmask 1043458
        %v419 = vsel %vm418, %v397, %v415
        %v420 = vrot.slane %v419, 2
        %v423 = vld [vmem:[%s6 + $0x1] sm:$0x1]
        %424 = vst [vmem:[#allocation1] ss:$4 sm:$0xff] %v417
        %v425 = vld.sshfl [vmem:[#allocation1 + $0x8] sm:$0xff pattern:$0x73625140]
        %s426 = scalar_lea.vmem [#allocation1], 32
        %427 = vst [vmem:[%s426] ss:$4 sm:$0xff] %v420
        %v428 = vld.sshfl [vmem:[#allocation1 + $0x28] sm:$0xff pattern:$0x73625140]
        %v431 = vsel %vm416, %v425, -inf
        %v432 = vrot.slane %v431, 4
        %v433 = vmax.f32 %v431, %v432
        %v434 = vrot.slane %v433, 2
        %v435 = vmax.f32 %v433, %v434
        %v436 = vrot.slane %v435, 1
        %v437 = vmax.f32 %v435, %v436
        %v438 = vsel %vm416, %v428, -inf
        %v439 = vrot.slane %v438, 4
        %v440 = vmax.f32 %v438, %v439
        %v441 = vrot.slane %v440, 2
        %v442 = vmax.f32 %v440, %v441
        %v443 = vrot.slane %v442, 1
        %v444 = vmax.f32 %v442, %v443
        %447 = vrot.lane.b32.xlu0 %v437, 96
        %v448 = vpop.permute.xlu0 %447
        %449 = vrot.lane.b32.xlu0 %v444, 96
        %v450 = vpop.permute.xlu0 %449
        %v453 = vmax.f32 %v437, %v448
        %v454 = vmax.f32 %v444, %v450
        %455 = vrot.lane.b32.xlu0 %v437, 64
        %v456 = vpop.permute.xlu0 %455
        %457 = vrot.lane.b32.xlu0 %v444, 64
        %v458 = vpop.permute.xlu0 %457
        %v461 = vmax.f32 %v453, %v456
        %v462 = vmax.f32 %v454, %v458
        %463 = vrot.lane.b32.xlu0 %v437, 32
        %v464 = vpop.permute.xlu0 %463
        %465 = vrot.lane.b32.xlu0 %v444, 32
        %v466 = vpop.permute.xlu0 %465
        %v469 = vmax.f32 %v461, %v464
        %v470 = vmax.f32 %v462, %v466
        %v471 = vperm.slane %v423, 0
        %v472 = vmax.f32 %v469, %v471
        %v473 = vmax.f32 %v470, %v471
        %v476 = vrot.slane %v473, 7
        %vm477 = vcmask 1041409
        %v478 = vsel %vm477, %v476, %v472
        %480 = vrot.lane.b32.xlu0 %v478, 32
        %v481 = vpop.permute.xlu0 %480
        %483 = vrot.lane.b32.xlu0 %v478, 64
        %v484 = vpop.permute.xlu0 %483
        %486 = vrot.lane.b32.xlu0 %v478, 96
        %v487 = vpop.permute.xlu0 %486
        %vm489 = vcmask 261120
        %v490 = vsel %vm489, %v478, %v481
        %vm491 = vcmask 523264
        %v492 = vsel %vm491, %v490, %v484
        %vm493 = vcmask 785408
        %v494 = vsel %vm493, %v492, %v487
        %v496 = vrot.slane %v494, 1
        %v497 = vperm.slane %v494, 0
        %v498 = vperm.slane %v496, 0
        %v501 = vrot.slane %v417, 2
        %v502 = vrot.slane %v420, 2
        %v505 = vsub.f32 %v501, %v497
        %v506 = vsub.f32 %v502, %v498
        %v507 = vmul.f32 %v505, 1.442695
        %v508 = vpow.pop %v507
        %v509 = vmul.f32 %v506, 1.442695
        %v510 = vpow.pop %v509
        %v511 = vsel %vm416, %v508, 0.0
        %v512 = vrot.slane %v511, 4
        %v513 = vadd.f32 %v511, %v512
        %v514 = vrot.slane %v513, 2
        %v515 = vadd.f32 %v513, %v514
        %v516 = vrot.slane %v515, 1
        %v517 = vadd.f32 %v515, %v516
        %v518 = vsel %vm416, %v510, 0.0
        %v519 = vrot.slane %v518, 4
        %v520 = vadd.f32 %v518, %v519
        %v521 = vrot.slane %v520, 2
        %v522 = vadd.f32 %v520, %v521
        %v523 = vrot.slane %v522, 1
        %v524 = vadd.f32 %v522, %v523
        %527 = vrot.lane.b32.xlu0 %v517, 96
        %v528 = vpop.permute.xlu0 %527
        %529 = vrot.lane.b32.xlu0 %v524, 96
        %v530 = vpop.permute.xlu0 %529
        %v533 = vadd.f32 %v517, %v528
        %v534 = vadd.f32 %v524, %v530
        %535 = vrot.lane.b32.xlu0 %v517, 64
        %v536 = vpop.permute.xlu0 %535
        %537 = vrot.lane.b32.xlu0 %v524, 64
        %v538 = vpop.permute.xlu0 %537
        %v541 = vadd.f32 %v533, %v536
        %v542 = vadd.f32 %v534, %v538
        %543 = vrot.lane.b32.xlu0 %v517, 32
        %v544 = vpop.permute.xlu0 %543
        %545 = vrot.lane.b32.xlu0 %v524, 32
        %v546 = vpop.permute.xlu0 %545
        %v549 = vadd.f32 %v541, %v544
        %v550 = vadd.f32 %v542, %v546
        %v551 = vsub.f32 %v471, %v478
        %v552 = vmul.f32 %v551, 1.442695
        %v553 = vpow.pop %v552
        %v555 = vrot.slane %v553, 1
        %v558 = vadd.f32 %v549, %v553
        %v559 = vadd.f32 %v550, %v555
        %v560 = vrcp.pop %v558
        %v561 = vrcp.pop %v559
        %v564 = vrot.slane %v561, 7
        %v565 = vsel %vm477, %v564, %v560
        %567 = vrot.lane.b32.xlu0 %v565, 32
        %v568 = vpop.permute.xlu0 %567
        %570 = vrot.lane.b32.xlu0 %v565, 64
        %v571 = vpop.permute.xlu0 %570
        %573 = vrot.lane.b32.xlu0 %v565, 96
        %v574 = vpop.permute.xlu0 %573
        %v576 = vsel %vm489, %v565, %v568
        %v577 = vsel %vm491, %v576, %v571
        %v578 = vsel %vm493, %v577, %v574
        %v579 = vmul.f32 %v508, %v417
        %v580 = vmul.f32 %v510, %v420
        %v581 = vsel %vm416, %v579, 0.0
        %v582 = vrot.slane %v581, 4
        %v583 = vadd.f32 %v581, %v582
        %v584 = vrot.slane %v583, 2
        %v585 = vadd.f32 %v583, %v584
        %v586 = vrot.slane %v585, 1
        %v587 = vadd.f32 %v585, %v586
        %v588 = vsel %vm416, %v580, 0.0
        %v589 = vrot.slane %v588, 4
        %v590 = vadd.f32 %v588, %v589
        %v591 = vrot.slane %v590, 2
        %v592 = vadd.f32 %v590, %v591
        %v593 = vrot.slane %v592, 1
        %v594 = vadd.f32 %v592, %v593
        %v596 = vrot.slane %v578, 1
        %v599 = vmul.f32 %v587, %v578
        %v600 = vmul.f32 %v594, %v596
        %v601 = vld [vmem:[%s6] sm:$0x1]
        %v602 = vld [vmem:[%s6 + $0x2] sm:$0x1]
        %v603 = vmul.f32 %v553, %v565
        %v604 = vperm.slane %v602, 0
        %v605 = vmul.f32 %v603, %v604
        %v606 = vperm.slane %v601, 0
        %v607 = vadd.f32 %v605, %v606
        %v608 = vsel %vm489, %v607, 0.0
        %v610 = vrot.slane %v608, 1
        %v613 = vadd.f32 %v599, %v608
        %v614 = vadd.f32 %v600, %v610
        %v615 = vld [vmem:[%s6 + $0x3] sm:$0x1]
        %v616 = vld [vmem:[%s6 + $0x4] sm:$0x1]
        %v617 = vld [vmem:[%s6 + $0x5] sm:$0x1]
        %v618 = vpack.c.bf16 %v613, %v613
        %v619 = vpack.c.bf16 %v614, %v614
        %v620 = vld [vmem:[%s2] sm:$0xf]
        %v621 = vld [vmem:[%s2 + $0x4] sm:$0xf]
        %v622 = vld [vmem:[%s2 + $0x8] sm:$0xf]
        %v623 = vld [vmem:[%s2 + $0xc] sm:$0xf]
        %v624 = vld [vmem:[%s2 + $0x10] sm:$0xf]
        %v625 = vld [vmem:[%s2 + $0x14] sm:$0xf]
        %v626 = vld [vmem:[%s2 + $0x18] sm:$0xf]
        %v627 = vld [vmem:[%s2 + $0x1c] sm:$0xf]
        %v628 = vld [vmem:[%s2 + $0x20] sm:$0xf]
        %v629 = vld [vmem:[%s2 + $0x24] sm:$0xf]
        %v630 = vld [vmem:[%s2 + $0x28] sm:$0xf]
        %v631 = vld [vmem:[%s2 + $0x2c] sm:$0xf]
        %v632 = vld [vmem:[%s2 + $0x30] sm:$0xf]
        %v633 = vld [vmem:[%s2 + $0x34] sm:$0xf]
        %v634 = vld [vmem:[%s2 + $0x38] sm:$0xf]
        %v635 = vld [vmem:[%s2 + $0x3c] sm:$0xf]
        %v636 = vperm.slane %v615, 0
        %v639 = vunpack.c.l.b16 %v618
        %v640 = vunpack.c.l.b16 %v619
        %v641 = vrot.slane %v640, 7
        %v642 = vsel %vm477, %v641, %v639
        %v643 = vpack.c.b16 %v642, %v642
        %v661 = vunpack.c.l.b16 %v620
        %v662 = vunpack.c.l.b16 %v621
        %v663 = vunpack.c.l.b16 %v622
        %v664 = vunpack.c.l.b16 %v623
        %v665 = vunpack.c.l.b16 %v624
        %v666 = vunpack.c.l.b16 %v625
        %v667 = vunpack.c.l.b16 %v626
        %v668 = vunpack.c.l.b16 %v627
        %v669 = vunpack.c.l.b16 %v628
        %v670 = vunpack.c.l.b16 %v629
        %v671 = vunpack.c.l.b16 %v630
        %v672 = vunpack.c.l.b16 %v631
        %v673 = vunpack.c.l.b16 %v632
        %v674 = vunpack.c.l.b16 %v633
        %v675 = vunpack.c.l.b16 %v634
        %v676 = vunpack.c.l.b16 %v635
        %v677 = vpack.c.b16 %v662, %v661
        %v678 = vpack.c.b16 %v664, %v663
        %v679 = vpack.c.b16 %v666, %v665
        %v680 = vpack.c.b16 %v668, %v667
        %v681 = vpack.c.b16 %v670, %v669
        %v682 = vpack.c.b16 %v672, %v671
        %v683 = vpack.c.b16 %v674, %v673
        %v684 = vpack.c.b16 %v676, %v675
        %693 = vmatpush.bf16.msra.mxu0 %v684
        %694 = vmatpush.bf16.msra.mxu0 %v683
        %695 = vmatpush.bf16.msra.mxu0 %v682
        %696 = vmatpush.bf16.msra.mxu0 %v681
        %697 = vmatpush.bf16.msra.mxu0 %v680
        %698 = vmatpush.bf16.msra.mxu0 %v679
        %699 = vmatpush.bf16.msra.mxu0 %v678
        %700 = vmatpush.bf16.msra.mxu0 %v677
        %701 = vmatmul.bf16.gmra.mxu0 %v643
        %v702 = vpop.f32.mrf.mxu0
        %v703 = vadd.f32 %v636, %v702
        %v704 = vpop.f32.mrf.mxu0
        %705 = vdwg.mxu0
        %vm706 = vcmask 254976
        %v707 = vsel %vm706, %v703, 0.0
        %708 = vadd.xlane.f32.xlu0 %v707
        %v709 = vpop.xlane.xlu0 %708
        %v710 = vrcp.pop 32.0
        %v711 = vmul.f32 32.0, %v710
        %v712 = vsub.f32 1.0, %v711
        %v713 = vmul.f32 %v710, %v712
        %v714 = vadd.f32 %v710, %v713
        %vm715 = vweird.f32 %v710
        %v716 = vsel %vm715, %v710, %v714
        %v717 = vmul.f32 %v709, %v716
        %v718 = vsub.f32 %v703, %v717
        %v719 = vmul.f32 %v718, %v718
        %v720 = vsel %vm706, %v719, 0.0
        %721 = vadd.xlane.f32.xlu0 %v720
        %v722 = vpop.xlane.xlu0 %721
        %v723 = vmul.f32 %v722, %v716
        %v724 = vadd.f32 %v723, 1e-05
        %v725 = vrsqrt.pop %v724
        %v726 = vmul.f32 %v725, %v724
        %v727 = vmul.f32 %v726, %v725
        %v728 = vmul.f32 0.5, %v727
        %v729 = vsub.f32 1.5, %v728
        %v730 = vmul.f32 %v725, %v729
        %vm731 = vweird.f32 %v724
        %vm732 = vweird.f32 %v725
        %vm733 = vmor %vm731, %vm732
        %v734 = vsel %vm733, %v725, %v730
        %v735 = vmul.f32 %v718, %v734
        %v736 = vperm.slane %v616, 0
        %v737 = vmul.f32 %v735, %v736
        %v738 = vperm.slane %v617, 0
        %v739 = vadd.f32 %v737, %v738
        %v740 = vld [vmem:[%s6 + $0x6] sm:$0x1]
        %v741 = vld [vmem:[%s6 + $0x7] sm:$0x1]
        %v742 = vpack.c.bf16 %v739, %v739
        %v743 = vld [vmem:[%s3] sm:$0xf]
        %v744 = vld [vmem:[%s3 + $0x4] sm:$0xf]
        %v745 = vld [vmem:[%s3 + $0x8] sm:$0xf]
        %v746 = vld [vmem:[%s3 + $0xc] sm:$0xf]
        %v747 = vperm.slane %v740, 0
        %v752 = vunpack.c.l.b16 %v743
        %v753 = vunpack.c.l.b16 %v744
        %v754 = vunpack.c.l.b16 %v745
        %v755 = vunpack.c.l.b16 %v746
        %v756 = vpack.c.b16 %v753, %v752
        %v757 = vpack.c.b16 %v755, %v754
        %v761 = vsel %vm489, %v742, 0
        %763 = vmatpush.bf16.msra.mxu0 0
        %764 = vmatpush.bf16.msra.mxu0 0
        %765 = vmatpush.bf16.msra.mxu0 0
        %766 = vmatpush.bf16.msra.mxu0 0
        %767 = vmatpush.bf16.msra.mxu0 0
        %768 = vmatpush.bf16.msra.mxu0 0
        %769 = vmatpush.bf16.msra.mxu0 %v757
        %770 = vmatpush.bf16.msra.mxu0 %v756
        %771 = vmatmul.bf16.gmra.mxu0 %v761
        %v772 = vpop.f32.mrf.mxu0
        %v773 = vadd.f32 %v747, %v772
        %v774 = vpop.f32.mrf.mxu0
        %775 = vdwg.mxu0
        %v776 = vmax.f32 %v773, 0.0
        %v777 = vpack.c.bf16 %v776, %v776
        %v778 = vld [vmem:[%s4] sm:$0xf]
        %v779 = vld [vmem:[%s4 + $0x4] sm:$0xf]
        %v780 = vld [vmem:[%s4 + $0x8] sm:$0xf]
        %v781 = vld [vmem:[%s4 + $0xc] sm:$0xf]
        %v782 = vld [vmem:[%s4 + $0x10] sm:$0xf]
        %v783 = vld [vmem:[%s4 + $0x14] sm:$0xf]
        %v784 = vld [vmem:[%s4 + $0x18] sm:$0xf]
        %v785 = vld [vmem:[%s4 + $0x1c] sm:$0xf]
        %v786 = vperm.slane %v741, 0
        %v795 = vunpack.c.l.b16 %v778
        %v796 = vunpack.c.l.b16 %v779
        %v797 = vunpack.c.l.b16 %v780
        %v798 = vunpack.c.l.b16 %v781
        %v799 = vunpack.c.l.b16 %v782
        %v800 = vunpack.c.l.b16 %v783
        %v801 = vunpack.c.l.b16 %v784
        %v802 = vunpack.c.l.b16 %v785
        %v803 = vpack.c.b16 %v796, %v795
        %v804 = vpack.c.b16 %v798, %v797
        %v805 = vpack.c.b16 %v800, %v799
        %v806 = vpack.c.b16 %v802, %v801
        %v812 = vsel %vm491, %v777, 0
        %814 = vmatpush.bf16.msra.mxu0 0
        %815 = vmatpush.bf16.msra.mxu0 0
        %816 = vmatpush.bf16.msra.mxu0 0
        %817 = vmatpush.bf16.msra.mxu0 0
        %818 = vmatpush.bf16.msra.mxu0 %v806
        %819 = vmatpush.bf16.msra.mxu0 %v805
        %820 = vmatpush.bf16.msra.mxu0 %v804
        %821 = vmatpush.bf16.msra.mxu0 %v803
        %822 = vmatmul.bf16.gmra.mxu0 %v812
        %v823 = vpop.f32.mrf.mxu0
        %v824 = vadd.f32 %v786, %v823
        %v825 = vpop.f32.mrf.mxu0
        %826 = vdwg.mxu0
        %v827 = vadd.f32 %v739, %v824
        %v828 = vsel %vm706, %v827, 0.0
        %829 = vadd.xlane.f32.xlu0 %v828
        %v830 = vpop.xlane.xlu0 %829
        %v831 = vmul.f32 %v830, %v716
        %v832 = vsub.f32 %v827, %v831
        %v833 = vmul.f32 %v832, %v832
        %v834 = vsel %vm706, %v833, 0.0
        %835 = vadd.xlane.f32.xlu0 %v834
        %v836 = vpop.xlane.xlu0 %835
        %v837 = vmul.f32 %v836, %v716
        %v838 = vadd.f32 %v837, 1e-05
        %v839 = vrsqrt.pop %v838
        %v840 = vmul.f32 %v839, %v838
        %v841 = vmul.f32 %v840, %v839
        %v842 = vmul.f32 0.5, %v841
        %v843 = vsub.f32 1.5, %v842
        %v844 = vmul.f32 %v839, %v843
        %vm845 = vweird.f32 %v838
        %vm846 = vweird.f32 %v839
        %vm847 = vmor %vm845, %vm846
        %v848 = vsel %vm847, %v839, %v844
        %v849 = vmul.f32 %v832, %v848
        %v850 = vld [vmem:[%s6 + $0x8] sm:$0x1]
        %v851 = vpack.c.bf16 %v849, %v849
        %v852 = vld [vmem:[%s5] sm:$0xf]
        %v853 = vld [vmem:[%s5 + $0x4] sm:$0xf]
        %v854 = vld [vmem:[%s5 + $0x8] sm:$0xf]
        %v855 = vld [vmem:[%s5 + $0xc] sm:$0xf]
        %v856 = vperm.slane %v850, 0
        %v861 = vunpack.c.l.b16 %v852
        %v862 = vunpack.c.l.b16 %v853
        %v863 = vunpack.c.l.b16 %v854
        %v864 = vunpack.c.l.b16 %v855
        %v865 = vpack.c.b16 %v862, %v861
        %v866 = vpack.c.b16 %v864, %v863
        %v870 = vsel %vm489, %v851, 0
        %872 = vmatpush.bf16.msra.mxu0 0
        %873 = vmatpush.bf16.msra.mxu0 0
        %874 = vmatpush.bf16.msra.mxu0 0
        %875 = vmatpush.bf16.msra.mxu0 0
        %876 = vmatpush.bf16.msra.mxu0 0
        %877 = vmatpush.bf16.msra.mxu0 0
        %878 = vmatpush.bf16.msra.mxu0 %v866
        %879 = vmatpush.bf16.msra.mxu0 %v865
        %880 = vmatmul.bf16.gmra.mxu0 %v870
        %v881 = vpop.f32.mrf.mxu0
        %v882 = vadd.f32 %v856, %v881
        %v883 = vpop.f32.mrf.mxu0
        %884 = vdwg.mxu0
        %v886 = vrot.slane %v882, 1
        %vm888 = vcmask 188416
        %889 = vst.msk [vmem:[%s272] sm:$0x1] %vm888, %v882
        %890 = vst.msk [vmem:[%s272 + $0x1] sm:$0x1] %vm888, %v886
        %s891 = sand.u32 %s181, 1
        %s892 = scalar_lea.sflag [#allocation3], %s891
        %s893 = sand.u32 %s181, 1
        %s894 = smul.addr %s893, 2
        %s895 = scalar_lea.vmem [#allocation2], %s894
        // Predicated region
        $region49: #{transformer_alpha_classifier.1} parent=47 // pred_check
          %p896 = pneg %p191
        $region50: #{transformer_alpha_classifier.1} parent=47 // pred_check_branch
          %898 = sbr.rel (%p896) target = $region52
        $region51: #{transformer_alpha_classifier.1} parent=47 // pred_region
          %s899 = smul.u32 2, %s21
          %901 = vsyncadd %s892, 0
          %s902 = scalar_lea.hbm %s7, %s899
          %s903 = sshll.u32 %s895, 4
          %s904 = int_to_ptr.vmem [resolvable:$true] %s903
          %s905 = sshll.u32 %s902, 4
          %s906 = int_to_ptr.hbm [resolvable:$true] %s905
          %911 = dma.vmem_to_hbm [thread:$0]  %s904, 32, %s906, %s892, 16, 16, 1
        $region52: #{transformer_alpha_classifier.1} parent=47 // pred_fallthru
          _
      $region48: #{transformer_alpha_classifier.1} parent=5 // pred_fallthru
        _
      %p912 = scmp.le.s32.totalorder 2, %s16
      // Predicated region
      $region53: #{transformer_alpha_classifier.1} parent=5 // pred_check
        %p913 = pneg %p912
      $region54: #{transformer_alpha_classifier.1} parent=5 // pred_check_branch
        %915 = sbr.rel (%p913) target = $region56
      $region55: #{transformer_alpha_classifier.1} parent=5 // pred_region
        %s916 = ssub.s32 %s16, 2
        // Predicated region
        $region57: #{transformer_alpha_classifier.1} parent=55 // pred_check
          %p917 = pneg %p197
        $region58: #{transformer_alpha_classifier.1} parent=55 // pred_check_branch
          %919 = sbr.rel (%p917) target = $region60
        $region59: #{transformer_alpha_classifier.1} parent=55 // pred_region
          %s920 = sand.u32 %s182, 1
          %s921 = scalar_lea.sflag [#allocation3], %s920
          %s922 = sand.u32 %s182, 1
          %s923 = smul.addr %s922, 2
          %s924 = scalar_lea.vmem [#allocation2], %s923
          %926 = dma.done %s921, 32
        $region60: #{transformer_alpha_classifier.1} parent=55 // pred_fallthru
          _
      $region56: #{transformer_alpha_classifier.1} parent=5 // pred_fallthru
        _
    $region6: #{transformer_alpha_classifier.1} parent=1 // loop_footer
      %s20 = sadd.s32 1, %s16
    $region7: #{transformer_alpha_classifier.1} parent=1 // loop_footer_branch
      %15 = sbr.rel target = $region3
    $region8: #{transformer_alpha_classifier.1} parent=1 // loop_exit
      _
    %927 = vsyncpa [#allocation3], 1
    %s928 = scalar_lea.sflag [#allocation3], 1
    %929 = vsyncpa %s928, 1

</llo_original>
